<compile_context>
chip_gen: v7x
topology: tpu7x:2x2x1
jax: 0.10.0
libtpu: 0.0.40
codegen_flags: <defaults>
</compile_context>

<pallas_src>
import functools

import jax
import jax.numpy as jnp
from jax.experimental import pallas as pl
from jax.experimental.pallas import tpu as pltpu


# --------------------------------------------------------------------------------------
# Hardware presets / tiling helpers
# --------------------------------------------------------------------------------------
def _round_up(x, m):
    return ((x + m - 1) // m) * m


def _sublane_align(itemsize):
    # sublane packing minimum per dtype: f32 -> 8, bf16 -> 16, int8/fp8 -> 32
    return {4: 8, 2: 16, 1: 32}.get(itemsize, 8)


def _hw_presets():
    """Per-generation tile / scoped-VMEM presets.

    v5e/v6e have 128 MiB physical VMEM and want the largest output tiles (v6e needs the
    most flops/byte headroom); v7x has only 64 MiB per TC and 2 TCs, so both the tiles and
    the scoped limit are capped there.
    """
    try:
        vmem = int(pltpu.get_tpu_info().vmem_capacity_bytes)
    except Exception:  # non-TPU trace / older runtime: fall back to the safest preset
        vmem = 64 * 1024 * 1024
    if vmem > 96 * 1024 * 1024:  # v5e / v6e class (128 MiB VMEM, 1 TC)
        return dict(tm=1024, tn=2048, tk=2048, vmem_limit=96 * 1024 * 1024, two_tc=False)
    # v7x class (64 MiB VMEM per TC, 2 TCs per chip)
    return dict(tm=512, tn=1024, tk=2048, vmem_limit=48 * 1024 * 1024, two_tc=True)


def _tile_and_pad(dim, preferred, align):
    """Block size + padded extent along one axis.

    If the whole dim fits in one block we use the full extent (always legal, no padding
    copy, and for tk this means "full D when it fits").  Otherwise the tile is `preferred`
    rounded down to a multiple of `align` and the dim is padded up to a multiple of the
    tile — never fall back to a full-dim block for e.g. V=50257.
    """
    preferred = max(align, (preferred // align) * align)
    if dim <= preferred:
        return dim, dim
    return preferred, _round_up(dim, preferred)


# --------------------------------------------------------------------------------------
# GPTLMHead forward: logits = x @ weight^T (+ bias)
# --------------------------------------------------------------------------------------
def _make_lm_head_kernel(has_bias):
    def kernel(*refs):
        if has_bias:
            x_ref, w_ref, b_ref, o_ref, acc_ref = refs
        else:
            x_ref, w_ref, o_ref, acc_ref = refs
            b_ref = None

        k = pl.program_id(2)

        @pl.when(k == 0)
        def _():
            acc_ref[...] = jnp.zeros_like(acc_ref)

        # x tile: (tm, tk), w tile: (tn, tk) -> contract last dims (x @ W^T), f32 accumulate.
        # TODO(synk): if a bundle dump shows a per-step vxpose for this lane-contracting RHS,
        # pre-transpose the head weight to (D, V) once in HBM and use a (0,)-contraction.
        acc_ref[...] += jax.lax.dot_general(
            x_ref[...], w_ref[...],
            dimension_numbers=(((1,), (1,)), ((), ())),
            preferred_element_type=jnp.float32,
        )

        @pl.when(k == pl.num_programs(2) - 1)
        def _():
            acc = acc_ref[...]
            if has_bias:
                acc = acc + b_ref[...].astype(jnp.float32)
            o_ref[...] = acc.astype(o_ref.dtype)

    return kernel


@functools.partial(jax.jit, static_argnames=("out_dtype", "tm", "tn", "tk"))
def gpt_lm_head(x, weight, bias=None, *, out_dtype=None, tm=None, tn=None, tk=None):
    """x: (B, S, D), weight: (V, D), bias: (V,) or None -> logits (B, S, V)."""
    B, S, D = x.shape
    V, D2 = weight.shape
    assert D2 == D
    M = B * S
    out_dtype = out_dtype or x.dtype

    p = _hw_presets()
    sub = _sublane_align(x.dtype.itemsize)
    tm = tm or p["tm"]
    tn = tn or p["tn"]
    tk = tk or p["tk"]

    tm, M_pad = _tile_and_pad(M, tm, sub)     # sublane of x / out blocks
    tn, V_pad = _tile_and_pad(V, tn, 128)     # lane of out block, sublane of w block
    tk, D_pad = _tile_and_pad(D, tk, 128)     # lane of x / w blocks

    # v7x: keep the "parallel" (M/tm, V/tn) grid >= 2 blocks per TensorCore.
    if p["two_tc"]:
        while (M_pad // tm) * (V_pad // tn) < 4 and tn % 256 == 0:
            tn //= 2
            V_pad = _round_up(V, tn)

    x2 = x.reshape(M, D)                      # contiguous reshape: no HBM copy
    if (M_pad, D_pad) != (M, D):
        x2 = jnp.pad(x2, ((0, M_pad - M), (0, D_pad - D)))
    w2 = weight                               # native (V, D) layout, padded only if needed
    if (V_pad, D_pad) != (V, D):
        w2 = jnp.pad(w2, ((0, V_pad - V), (0, D_pad - D)))

    in_specs = [
        pl.BlockSpec((tm, tk), lambda i, j, k: (i, k)),   # x tile
        pl.BlockSpec((tn, tk), lambda i, j, k: (j, k)),   # weight tile
    ]
    inputs = [x2, w2]
    if bias is not None:
        b2 = bias.reshape(1, V)
        if V_pad != V:
            b2 = jnp.pad(b2, ((0, 0), (0, V_pad - V)))
        in_specs.append(pl.BlockSpec((1, tn), lambda i, j, k: (0, j)))
        inputs.append(b2)

    grid = (M_pad // tm, V_pad // tn, D_pad // tk)

    out = pl.pallas_call(
        _make_lm_head_kernel(bias is not None),
        out_shape=jax.ShapeDtypeStruct((M_pad, V_pad), out_dtype),
        grid_spec=pltpu.PrefetchScalarGridSpec(
            num_scalar_prefetch=0,
            grid=grid,
            in_specs=in_specs,
            out_specs=pl.BlockSpec((tm, tn), lambda i, j, k: (i, j)),
            scratch_shapes=[pltpu.VMEM((tm, tn), jnp.float32)],
        ),
        compiler_params=pltpu.CompilerParams(
            dimension_semantics=("parallel", "parallel", "arbitrary"),
            vmem_limit_bytes=p["vmem_limit"],
        ),
    )(*inputs)

    if (M_pad, V_pad) != (M, V):
        out = out[:M, :V]
    return out.reshape(B, S, V)


# --------------------------------------------------------------------------------------
# Shifted cross-entropy loss (companion kernel) — vocab-chunked online LSE
# --------------------------------------------------------------------------------------
def _make_ce_kernel(vocab_size):
    def kernel(lbl_ref, logits_ref, out_ref, m_ref, l_ref, tgt_ref):
        v = pl.program_id(2)

        @pl.when(v == 0)
        def _():
            m_ref[...] = jnp.full_like(m_ref, -jnp.inf)
            l_ref[...] = jnp.zeros_like(l_ref)
            tgt_ref[...] = jnp.zeros_like(tgt_ref)

        x = logits_ref[0].astype(jnp.float32)       # (tr, tv) — upcast in-register
        lbl = lbl_ref[0]                            # (tr, 1) int32; -1 marks padded rows

        tv = x.shape[1]
        col = jax.lax.broadcasted_iota(jnp.int32, x.shape, 1) + v * tv
        x = jnp.where(col < vocab_size, x, -jnp.inf)  # mask a (possible) padded vocab tail

        # online log-sum-exp over vocab chunks
        m_prev = m_ref[...]
        m_new = jnp.maximum(m_prev, jnp.max(x, axis=-1, keepdims=True))
        alpha = jnp.exp(m_prev - m_new)
        l_ref[...] = alpha * l_ref[...] + jnp.sum(jnp.exp(x - m_new), axis=-1, keepdims=True)
        m_ref[...] = m_new

        # target-logit gather via select (no one-hot multiply)
        tgt_ref[...] += jnp.sum(jnp.where(col == lbl, x, 0.0), axis=-1, keepdims=True)

        @pl.when(v == pl.num_programs(2) - 1)
        def _():
            valid = lbl >= 0                         # keep the select: garbage rows can't NaN
            lse = m_ref[...] + jnp.log(l_ref[...])
            # per-row loss vector; the scalar reduce happens in the wrapper, not per step
            out_ref[0] = jnp.where(valid, lse - tgt_ref[...], 0.0)

    return kernel


@jax.jit
def gpt_lm_loss(logits, labels):
    """Mean cross entropy of logits[:, :-1, :] vs labels[:, 1:] — logits stay (B,S,V) in HBM."""
    B, S, V = logits.shape
    R = S - 1
    p = _hw_presets()

    sub = _sublane_align(logits.dtype.itemsize)
    tr = min(_round_up(R, sub), S, 256)       # row tile (multiple of sublane pack, or full S)
    n_r = pl.cdiv(R, tr)
    Rp = n_r * tr
    tv = V if V <= 2048 else 2048             # vocab chunk for the online LSE
    n_v = pl.cdiv(V, tv)

    # only the tiny labels array is shifted / padded; padded rows carry -1 (masked in-kernel)
    lbl = labels[:, 1:].astype(jnp.int32)
    lbl = jnp.pad(lbl, ((0, 0), (0, Rp - R)), constant_values=-1)[:, :, None]  # (B, Rp, 1)

    per_row = pl.pallas_call(
        _make_ce_kernel(V),
        out_shape=jax.ShapeDtypeStruct((B, Rp, 1), jnp.float32),
        grid_spec=pltpu.PrefetchScalarGridSpec(
            num_scalar_prefetch=0,
            grid=(B, n_r, n_v),
            in_specs=[
                pl.BlockSpec((1, tr, 1), lambda b, r, v: (b, r, 0)),    # shifted labels
                pl.BlockSpec((1, tr, tv), lambda b, r, v: (b, r, v)),   # shift via index_map
            ],
            out_specs=pl.BlockSpec((1, tr, 1), lambda b, r, v: (b, r, 0)),
            scratch_shapes=[pltpu.VMEM((tr, 1), jnp.float32)] * 3,      # m, l, target-logit
        ),
        compiler_params=pltpu.CompilerParams(
            # B / row-tile axes parallel so both v7x TensorCores get work; vocab is the
            # sequential online-LSE reduction.
            dimension_semantics=("parallel", "parallel", "arbitrary"),
            vmem_limit_bytes=p["vmem_limit"],
        ),
    )(lbl, logits)

    # TODO(synk): PyTorch CrossEntropyLoss(ignore_index=...) divides by the number of
    # non-ignored tokens; here the denominator is the static B*(S-1), matching the reference.
    return jnp.sum(per_row) / (B * R)


# --------------------------------------------------------------------------------------
# References + smoke test
# --------------------------------------------------------------------------------------
def _ref_lm_head(x, weight, bias=None):
    out = jnp.einsum("bsd,vd->bsv", x.astype(jnp.float32), weight.astype(jnp.float32))
    if bias is not None:
        out = out + bias.astype(jnp.float32)
    return out


def _ref_lm_loss(logits, labels):
    lg = logits[:, :-1, :].astype(jnp.float32)
    lb = labels[:, 1:]
    logp = jax.nn.log_softmax(lg, axis=-1)
    nll = -jnp.take_along_axis(logp, lb[..., None], axis=-1)[..., 0]
    return jnp.mean(nll)


if __name__ == "__main__":
    key = jax.random.PRNGKey(0)
    kx, kw, kb, kl = jax.random.split(key, 4)

    B, S, D, V = 2, 8, 32, 128

    # --- GPTLMHead forward (the module spec) ---
    x = jax.random.normal(kx, (B, S, D), dtype=jnp.float32)
    w = jax.random.normal(kw, (V, D), dtype=jnp.float32) * 0.05

    logits = gpt_lm_head(x, w)
    jax.block_until_ready(logits)
    ref_logits = _ref_lm_head(x, w)
    assert logits.shape == (B, S, V)
    assert jnp.allclose(logits.astype(jnp.float32), ref_logits, rtol=2e-2, atol=2e-3), (
        float(jnp.max(jnp.abs(logits.astype(jnp.float32) - ref_logits))))

    bias = jax.random.normal(kb, (V,), dtype=jnp.float32) * 0.05
    logits_b = gpt_lm_head(x, w, bias)
    jax.block_until_ready(logits_b)
    ref_logits_b = _ref_lm_head(x, w, bias)
    assert jnp.allclose(logits_b.astype(jnp.float32), ref_logits_b, rtol=2e-2, atol=2e-3)

    # --- bf16 logits output (review: halves the dominant (M, V) HBM writeback) ---
    logits_bf16 = gpt_lm_head(x, w, out_dtype=jnp.bfloat16)
    jax.block_until_ready(logits_bf16)
    assert jnp.allclose(logits_bf16.astype(jnp.float32), ref_logits, rtol=2e-2, atol=2e-2)

    # --- companion shifted cross-entropy loss over the bf16 logits ---
    labels = jax.random.randint(kl, (B, S), 0, V, dtype=jnp.int32)
    loss = gpt_lm_loss(logits_bf16, labels)
    jax.block_until_ready(loss)
    ref_loss = _ref_lm_loss(logits_bf16, labels)
    assert jnp.allclose(loss, ref_loss, rtol=1e-3, atol=1e-3), (float(loss), float(ref_loss))

    print("KERNEL_OK")
</pallas_src>

<mosaic_0001>
module attributes {stable_mosaic.version = 11 : i64} {
  func.func @kernel(%arg0: i32, %arg1: i32, %arg2: i32, %arg3: memref<16x32xf32, #tpu.memory_space<vmem>>, %arg4: memref<128x32xf32, #tpu.memory_space<vmem>>, %arg5: memref<16x128xf32, #tpu.memory_space<vmem>>, %arg6: memref<16x128xf32, #tpu.memory_space<vmem>>) attributes {dimension_semantics = [#tpu.dimension_semantics<parallel>, #tpu.dimension_semantics<parallel>, #tpu.dimension_semantics<arbitrary>], iteration_bounds = array<i64: 1, 1, 1>, scalar_prefetch = 0 : i64, scratch_operands = 1 : i64, tpu.core_type = #tpu.core_type<tc>, window_params = [{transform_indices = @transform_0, window_bounds = array<i64: 16, 32>}, {transform_indices = @transform_1, window_bounds = array<i64: 128, 32>}, {transform_indices = @transform_2, window_bounds = array<i64: 16, 128>}]} {
    %c0_i32 = arith.constant 0 : i32
    %0 = arith.cmpi eq, %arg2, %c0_i32 : i32
    %1 = arith.extui %0 : i1 to i32
    %c0_i32_0 = arith.constant 0 : i32
    %2 = arith.cmpi ne, %1, %c0_i32_0 : i32
    scf.if %2 {
      %cst_10 = arith.constant 0.000000e+00 : f32
      %12 = vector.broadcast %cst_10 : f32 to vector<16x128xf32>
      %c0_11 = arith.constant 0 : index
      %c0_12 = arith.constant 0 : index
      %13 = vector.load %arg6[%c0_11, %c0_12] : memref<16x128xf32, #tpu.memory_space<vmem>>, vector<16x128xf32>
      tpu.vector_store %arg6[%c0_11, %c0_12], %12 {strides = array<i32>} : memref<16x128xf32, #tpu.memory_space<vmem>>, vector<16x128xf32>,
    } else {
    }
    %c0 = arith.constant 0 : index
    %c0_1 = arith.constant 0 : index
    %3 = vector.load %arg6[%c0, %c0_1] : memref<16x128xf32, #tpu.memory_space<vmem>>, vector<16x128xf32>
    %c0_2 = arith.constant 0 : index
    %c0_3 = arith.constant 0 : index
    %4 = vector.load %arg3[%c0_2, %c0_3] : memref<16x32xf32, #tpu.memory_space<vmem>>, vector<16x32xf32>
    %c0_4 = arith.constant 0 : index
    %c0_5 = arith.constant 0 : index
    %5 = vector.load %arg4[%c0_4, %c0_5] : memref<128x32xf32, #tpu.memory_space<vmem>>, vector<128x32xf32>
    %cst = arith.constant dense<0.000000e+00> : vector<16x128xf32>
    %6 = tpu.matmul %4, %5, %cst {dimension_numbers = #tpu.dot_dimension_numbers<[1], [1], [0], [0], [0, 0, 1, 0], [], []>} : vector<16x32xf32>, vector<128x32xf32>, vector<16x128xf32> -> vector<16x128xf32>
    %7 = arith.addf %3, %6 : vector<16x128xf32>
    %c0_6 = arith.constant 0 : index
    %c0_7 = arith.constant 0 : index
    %8 = vector.load %arg6[%c0_6, %c0_7] : memref<16x128xf32, #tpu.memory_space<vmem>>, vector<16x128xf32>
    tpu.vector_store %arg6[%c0_6, %c0_7], %7 {strides = array<i32>} : memref<16x128xf32, #tpu.memory_space<vmem>>, vector<16x128xf32>,
    %c0_i32_8 = arith.constant 0 : i32
    %9 = arith.cmpi eq, %arg2, %c0_i32_8 : i32
    %10 = arith.extui %9 : i1 to i32
    %c0_i32_9 = arith.constant 0 : i32
    %11 = arith.cmpi ne, %10, %c0_i32_9 : i32
    scf.if %11 {
      %c0_10 = arith.constant 0 : index
      %c0_11 = arith.constant 0 : index
      %12 = vector.load %arg6[%c0_10, %c0_11] : memref<16x128xf32, #tpu.memory_space<vmem>>, vector<16x128xf32>
      %c0_12 = arith.constant 0 : index
      %c0_13 = arith.constant 0 : index
      %13 = vector.load %arg5[%c0_12, %c0_13] : memref<16x128xf32, #tpu.memory_space<vmem>>, vector<16x128xf32>
      tpu.vector_store %arg5[%c0_12, %c0_13], %12 {strides = array<i32>} : memref<16x128xf32, #tpu.memory_space<vmem>>, vector<16x128xf32>,
    } else {
    }
    return
  }
  func.func @transform_0(%arg0: i32, %arg1: i32, %arg2: i32) -> (i32, i32) {
    %c0_i32 = arith.constant 0 : i32
    return %arg0, %arg2 : i32, i32
  }
  func.func @transform_1(%arg0: i32, %arg1: i32, %arg2: i32) -> (i32, i32) {
    %c0_i32 = arith.constant 0 : i32
    return %arg1, %arg2 : i32, i32
  }
  func.func @transform_2(%arg0: i32, %arg1: i32, %arg2: i32) -> (i32, i32) {
    %c0_i32 = arith.constant 0 : i32
    return %arg0, %arg1 : i32, i32
  }
}

</mosaic_0001>

<llo_original>
// kernel: gpt_lm_head.1
$region0: #{gpt_lm_head.1}
  #allocation0 [shape = 'u32[]', space=smem, size = 0x4, offset = 0x4, fixed_abs, tag = 'smem constant byte address 0x4 - core index']
  #allocation1 [shape = 'u32[144,128]{1,0:T(1,128)}', space=vmem, size = 0x12000, scoped, tag = 'internal scratch']
  #allocation2 [shape = 'f32[16,128]{1,0:T(8,128)}', space=vmem, size = 0x2000, scoped, tag = 'scratch operand']
  %s0 = inlined_call_operand.vmem [shape: f32[16,32], index: 0, kind: input, shape index: {}]
  %s1 = inlined_call_operand.vmem [shape: f32[128,32], index: 1, kind: input, shape index: {}]
  %s2 = inlined_call_operand.hbm [shape: f32[16,128], index: 2, kind: output, shape index: {}]
  %s3 = sld [smem:[#allocation0]]
  $region26: #{gpt_lm_head.1} parent=0
    _
  %s5 = ssub.s32 1, %s3
  %s6 = scalar_select 0, %s5, %s3
  $region1: #{gpt_lm_head.1} parent=0
    #allocation3 [shape = 'u8[8192]{0}', space=vmem, size = 0x2000, scoped, tag = 'output window, operand 0, single buffered']
    #allocation4 [shape = 's32[1]{0}', space=sflag, size = 0x4, scoped, tag = 'scoped memory for gpt_lm_head.1']
    %7 = vsyncpa [#allocation4], 0
    // Predicated region
    $region2: #{gpt_lm_head.1} parent=1 // pred_check
      _
    $region3: #{gpt_lm_head.1} parent=1 // pred_check_branch
      %9 = sbr.rel (0) target = $region5
    $region4: #{gpt_lm_head.1} parent=1 // pred_region
      _
    $region5: #{gpt_lm_head.1} parent=1 // pred_fallthru
      _
    // Predicated region
    $region6: #{gpt_lm_head.1} parent=1 // pred_check
      _
    $region7: #{gpt_lm_head.1} parent=1 // pred_check_branch
      %11 = sbr.rel (0) target = $region9
    $region8: #{gpt_lm_head.1} parent=1 // pred_region
      _
    $region9: #{gpt_lm_head.1} parent=1 // pred_fallthru
      _
    %p12 = scmp.eq.s32.totalorder 0, 0
    // Predicated region
    $region10: #{gpt_lm_head.1} parent=1 // pred_check
      %p13 = pneg %p12
    $region11: #{gpt_lm_head.1} parent=1 // pred_check_branch
      %15 = sbr.rel (%p13) target = $region13
    $region12: #{gpt_lm_head.1} parent=1 // pred_region
      %16 = vst [vmem:[#allocation2] sm:$0xff] 0.0
      %17 = vst [vmem:[#allocation2 + $0x8] sm:$0xff] 0.0
    $region13: #{gpt_lm_head.1} parent=1 // pred_fallthru
      _
    %v18 = vld [vmem:[#allocation2] sm:$0xff]
    %v19 = vld [vmem:[#allocation2 + $0x8] sm:$0xff]
    %v20 = vld [vmem:[%s0] sm:$0xff]
    %v21 = vld [vmem:[%s0 + $0x8] sm:$0xff]
    %v22 = vld [vmem:[%s1] sm:$0xff]
    %v23 = vld [vmem:[%s1 + $0x8] sm:$0xff]
    %v24 = vld [vmem:[%s1 + $0x10] sm:$0xff]
    %v25 = vld [vmem:[%s1 + $0x18] sm:$0xff]
    %v26 = vld [vmem:[%s1 + $0x20] sm:$0xff]
    %v27 = vld [vmem:[%s1 + $0x28] sm:$0xff]
    %v28 = vld [vmem:[%s1 + $0x30] sm:$0xff]
    %v29 = vld [vmem:[%s1 + $0x38] sm:$0xff]
    %v30 = vld [vmem:[%s1 + $0x40] sm:$0xff]
    %v31 = vld [vmem:[%s1 + $0x48] sm:$0xff]
    %v32 = vld [vmem:[%s1 + $0x50] sm:$0xff]
    %v33 = vld [vmem:[%s1 + $0x58] sm:$0xff]
    %v34 = vld [vmem:[%s1 + $0x60] sm:$0xff]
    %v35 = vld [vmem:[%s1 + $0x68] sm:$0xff]
    %v36 = vld [vmem:[%s1 + $0x70] sm:$0xff]
    %v37 = vld [vmem:[%s1 + $0x78] sm:$0xff]
    %vm38 = vcmask 261120
    %v40 = vsel %vm38, %v20, 0
    %v43 = vsel %vm38, %v21, 0
    %v46 = vsel %vm38, %v22, 0
    %v49 = vsel %vm38, %v23, 0
    %v52 = vsel %vm38, %v24, 0
    %v55 = vsel %vm38, %v25, 0
    %v58 = vsel %vm38, %v26, 0
    %v61 = vsel %vm38, %v27, 0
    %v64 = vsel %vm38, %v28, 0
    %v67 = vsel %vm38, %v29, 0
    %v70 = vsel %vm38, %v30, 0
    %v73 = vsel %vm38, %v31, 0
    %v76 = vsel %vm38, %v32, 0
    %v79 = vsel %vm38, %v33, 0
    %v82 = vsel %vm38, %v34, 0
    %v85 = vsel %vm38, %v35, 0
    %v88 = vsel %vm38, %v36, 0
    %v91 = vsel %vm38, %v37, 0
    %93 = vmatprep.subr.mxu0 0.0
    %94 = vmatpush1.xpose.msra.mxu0 %v46
    %95 = vmatprep.subr.mxu0 0.0
    %96 = vmatpush1.xpose.msra.mxu0 %v49
    %97 = vmatprep.subr.mxu0 0.0
    %98 = vmatpush1.xpose.msra.mxu0 %v52
    %99 = vmatprep.subr.mxu0 0.0
    %100 = vmatpush1.xpose.msra.mxu0 %v55
    %101 = vmatprep.subr.mxu0 0.0
    %102 = vmatpush1.xpose.msra.mxu0 %v58
    %103 = vmatprep.subr.mxu0 0.0
    %104 = vmatpush1.xpose.msra.mxu0 %v61
    %105 = vmatprep.subr.mxu0 0.0
    %106 = vmatpush1.xpose.msra.mxu0 %v64
    %107 = vmatprep.subr.mxu0 0.0
    %108 = vmatpush1.xpose.msra.mxu0 %v67
    %109 = vmatprep.subr.mxu0 0.0
    %110 = vmatpush1.xpose.msra.mxu0 %v70
    %111 = vmatprep.subr.mxu0 0.0
    %112 = vmatpush1.xpose.msra.mxu0 %v73
    %113 = vmatprep.subr.mxu0 0.0
    %114 = vmatpush1.xpose.msra.mxu0 %v76
    %115 = vmatprep.subr.mxu0 0.0
    %116 = vmatpush1.xpose.msra.mxu0 %v79
    %117 = vmatprep.subr.mxu0 0.0
    %118 = vmatpush1.xpose.msra.mxu0 %v82
    %119 = vmatprep.subr.mxu0 0.0
    %120 = vmatpush1.xpose.msra.mxu0 %v85
    %121 = vmatprep.subr.mxu0 0.0
    %122 = vmatpush1.xpose.msra.mxu0 %v88
    %123 = vmatprep.subr.mxu0 0.0
    %124 = vmatpush1.xpose.msra.mxu0 %v91
    %125 = vmatprep.subr.mxu0 0.0
    %126 = vmatpush1.xpose.msra.mxu0 0.0
    %127 = vmatprep.subr.mxu0 0.0
    %128 = vmatpush1.xpose.msra.mxu0 0.0
    %129 = vmatprep.subr.mxu0 0.0
    %130 = vmatpush1.xpose.msra.mxu0 0.0
    %131 = vmatprep.subr.mxu0 0.0
    %132 = vmatpush1.xpose.msra.mxu0 0.0
    %133 = vmatprep.subr.mxu0 0.0
    %134 = vmatpush1.xpose.msra.mxu0 0.0
    %135 = vmatprep.subr.mxu0 0.0
    %136 = vmatpush1.xpose.msra.mxu0 0.0
    %137 = vmatprep.subr.mxu0 0.0
    %138 = vmatpush1.xpose.msra.mxu0 0.0
    %139 = vmatprep.subr.mxu0 0.0
    %140 = vmatpush1.xpose.msra.mxu0 0.0
    %141 = vmatprep.subr.mxu0 0.0
    %142 = vmatpush1.xpose.msra.mxu0 0.0
    %143 = vmatprep.subr.mxu0 0.0
    %144 = vmatpush1.xpose.msra.mxu0 0.0
    %145 = vmatprep.subr.mxu0 0.0
    %146 = vmatpush1.xpose.msra.mxu0 0.0
    %147 = vmatprep.subr.mxu0 0.0
    %148 = vmatpush1.xpose.msra.mxu0 0.0
    %149 = vmatprep.subr.mxu0 0.0
    %150 = vmatpush1.xpose.msra.mxu0 0.0
    %151 = vmatprep.subr.mxu0 0.0
    %152 = vmatpush1.xpose.msra.mxu0 0.0
    %153 = vmatprep.subr.mxu0 0.0
    %154 = vmatpush1.xpose.msra.mxu0 0.0
    %155 = vmatprep.subr.mxu0 0.0
    %156 = vmatpush1.xpose.msra.mxu0 0.0
    %157 = vmatprep.mubr.f32.mxu0 0.0
    %158 = vmatmul.mubr.f32.gmra.mrb[0].mxu0 %v40
    %v159 = vpop.f32.mrb[0].mxu0
    %v160 = vadd.f32 0.0, %v159
    %v161 = vpop.f32.mrb[0].mxu0
    %162 = vmatprep.mubr.f32.mxu0 0.0
    %163 = vmatmul.mubr.f32.gmra.mrb[0].mxu0 %v43
    %v164 = vpop.f32.mrb[0].mxu0
    %v165 = vadd.f32 0.0, %v164
    %v166 = vpop.f32.mrb[0].mxu0
    %167 = vdwg.mxu0
    %v168 = vadd.f32 %v18, %v160
    %v169 = vadd.f32 %v19, %v165
    %170 = vst [vmem:[#allocation2] sm:$0xff] %v168
    %171 = vst [vmem:[#allocation2 + $0x8] sm:$0xff] %v169
    // Predicated region
    $region14: #{gpt_lm_head.1} parent=1 // pred_check
      %p172 = pneg %p12
    $region15: #{gpt_lm_head.1} parent=1 // pred_check_branch
      %174 = sbr.rel (%p172) target = $region17
    $region16: #{gpt_lm_head.1} parent=1 // pred_region
      %v175 = vld [vmem:[#allocation2] sm:$0xff]
      %v176 = vld [vmem:[#allocation2 + $0x8] sm:$0xff]
      %177 = vst [vmem:[#allocation3] sm:$0xff] %v175
      %178 = vst [vmem:[#allocation3 + $0x8] sm:$0xff] %v176
    $region17: #{gpt_lm_head.1} parent=1 // pred_fallthru
      _
    // Predicated region
    $region18: #{gpt_lm_head.1} parent=1 // pred_check
      _
    $region19: #{gpt_lm_head.1} parent=1 // pred_check_branch
      %180 = sbr.rel (0) target = $region21
    $region20: #{gpt_lm_head.1} parent=1 // pred_region
      %s182 = ssub.s32 256, 256
      %183 = vsyncadd [#allocation4], %s182
      %s184 = sshll.u32 [#allocation3], 4
      %s185 = int_to_ptr.vmem [resolvable:$true] %s184
      %190 = dma.vmem_to_hbm [thread:$0]  %s185, 256, %s2, [#allocation4], 128, 128, 8
    $region21: #{gpt_lm_head.1} parent=1 // pred_fallthru
      _
    // Predicated region
    $region22: #{gpt_lm_head.1} parent=1 // pred_check
      _
    $region23: #{gpt_lm_head.1} parent=1 // pred_check_branch
      %192 = sbr.rel (0) target = $region25
    $region24: #{gpt_lm_head.1} parent=1 // pred_region
      %193 = dma.done [#allocation4], 256
    $region25: #{gpt_lm_head.1} parent=1 // pred_fallthru
      _
    %194 = vsyncpa [#allocation4], 1

</llo_original>
